<compile_context>
chip_gen: v6e
topology: v6e:2x2x1
jax: 0.10.0
libtpu: 0.0.40
codegen_flags: <defaults>
</compile_context>

<pallas_src>
import jax
import jax.numpy as jnp
from jax.experimental import pallas as pl
from jax.experimental.pallas import tpu as pltpu

IN_F = 100
H1, H2, H3, H4, OUT_F = 200, 200, 200, 100, 1


def mlp_kernel(x_ref,
               w1_ref, b1_ref,
               w2_ref, b2_ref,
               w3_ref, b3_ref,
               w4_ref, b4_ref,
               w5t_ref, b5t_ref,
               o_ref):
    # bf16 operands into the MXU, f32 accumulate / bias add / ReLU on the VPU.
    h = x_ref[...].astype(jnp.bfloat16)                                      # [TB, 100]

    h = jnp.dot(h, w1_ref[...], preferred_element_type=jnp.float32) + b1_ref[...]
    h = jnp.maximum(h, 0.0).astype(jnp.bfloat16)                             # [TB, 256]

    h = jnp.dot(h, w2_ref[...], preferred_element_type=jnp.float32) + b2_ref[...]
    h = jnp.maximum(h, 0.0).astype(jnp.bfloat16)                             # [TB, 256]

    h = jnp.dot(h, w3_ref[...], preferred_element_type=jnp.float32) + b3_ref[...]
    h = jnp.maximum(h, 0.0).astype(jnp.bfloat16)                             # [TB, 256]

    h = jnp.dot(h, w4_ref[...], preferred_element_type=jnp.float32) + b4_ref[...]
    h = jnp.maximum(h, 0.0).astype(jnp.bfloat16)                             # [TB, 128]

    # Final 100->1 layer computed transposed: XLU transpose of h (free slot),
    # then a tiny MXU pass -> (8, TB) lane-dense output block (row 0 real).
    out_t = jnp.dot(w5t_ref[...], h.T, preferred_element_type=jnp.float32)   # [8, TB]
    o_ref[...] = (out_t + b5t_ref[...]).astype(o_ref.dtype)


def _round_up(n, m):
    return ((n + m - 1) // m) * m


def _choose_tb(batch):
    if batch <= 256:
        # bf16 native tile is (16, 128): round tiny batches to 16 rows.
        return max(_round_up(batch, 16), 16)
    # Large batches: big tiles to amortize the ~0.35us/step pipeline overhead,
    # but keep >= 2 grid steps so ("parallel",) engages both v7x TensorCores.
    return min(1024, _round_up((batch + 1) // 2, 256))


def _const_spec(shape):
    """Weights/biases: block never changes (index_map -> (0,0)); single-buffer."""
    try:
        return pl.BlockSpec(shape, lambda i: (0, 0), pipeline_mode=pl.Buffered(1))
    except (AttributeError, TypeError):
        return pl.BlockSpec(shape, lambda i: (0, 0))


def student_o_forward(x, params):
    """x: [B, 100] float32 (or bfloat16). params: padded (W bf16, b f32) pairs
    from make_params(). Returns [B, 1] float32."""
    B, F = x.shape
    assert F == IN_F

    TB = _choose_tb(B)
    B_pad = _round_up(B, TB)
    # Pad only the ragged batch tail; no feature-dim widening pass over HBM.
    x_in = x if B_pad == B else jnp.pad(x, ((0, B_pad - B), (0, 0)))

    flat_args = [x_in]
    in_specs = [pl.BlockSpec((TB, F), lambda i: (i, 0))]
    for w, b in params:
        flat_args += [w, b]
        in_specs += [_const_spec(w.shape), _const_spec(b.shape)]

    out_t = pl.pallas_call(
        mlp_kernel,
        out_shape=jax.ShapeDtypeStruct((8, B_pad), jnp.float32),
        grid=(B_pad // TB,),
        in_specs=in_specs,
        out_specs=pl.BlockSpec((8, TB), lambda i: (0, i)),
        compiler_params=pltpu.CompilerParams(
            dimension_semantics=("parallel",)),  # batch tiles shard across v7x's 2 TCs
    )(*flat_args)

    return out_t[0, :B].reshape(B, 1)


def xavier_normal(key, fan_in, fan_out):
    # matches torch.nn.init.xavier_normal_ : std = sqrt(2 / (fan_in + fan_out))
    std = (2.0 / (fan_in + fan_out)) ** 0.5
    return std * jax.random.normal(key, (fan_in, fan_out), dtype=jnp.float32)


def make_params(key):
    """Padded (W bf16, b f32) pairs. All padding is zero, so the padded network
    computes exactly the 100->200->200->200->100->1 MLP (padded hidden units
    stay 0 through ReLU). Biases are zero, matching StudentO.init_weights();
    trained biases would go in the leading (real) lanes of each b."""
    dims = [(IN_F, H1), (H1, H2), (H2, H3), (H3, H4), (H4, OUT_F)]
    pads = [(IN_F, 256), (256, 256), (256, 256), (256, 128)]  # layers 1-4 [in, out_pad]
    keys = jax.random.split(key, 5)
    raw = [xavier_normal(k, ri, ro).astype(jnp.bfloat16)
           for k, (ri, ro) in zip(keys, dims)]

    params = []
    for i in range(4):
        (ri, ro), (pi, po) = dims[i], pads[i]
        w_pad = jnp.zeros((pi, po), jnp.bfloat16).at[:ri, :ro].set(raw[i])
        b_pad = jnp.zeros((1, po), jnp.float32)
        params.append((w_pad, b_pad))
    # Layer 5 stored transposed, padded to (8, 128): row 0 / cols :100 are real.
    w5t = jnp.zeros((8, 128), jnp.bfloat16).at[0, :H4].set(raw[4][:, 0])
    b5t = jnp.zeros((8, 1), jnp.float32)
    params.append((w5t, b5t))
    return params


def _reference(x, params):
    """Plain-JAX reference using the same padded bf16 weights (padding is zero,
    so this is exactly the 100->200->200->200->100->1 MLP)."""
    (w1, b1), (w2, b2), (w3, b3), (w4, b4), (w5t, b5t) = params
    h = x.astype(jnp.bfloat16)
    for w, b in ((w1, b1), (w2, b2), (w3, b3), (w4, b4)):
        h = jnp.dot(h, w, preferred_element_type=jnp.float32) + b
        h = jnp.maximum(h, 0.0).astype(jnp.bfloat16)
    out_t = jnp.dot(w5t, h.T, preferred_element_type=jnp.float32) + b5t
    return out_t[0].reshape(-1, 1)


if __name__ == "__main__":
    key = jax.random.PRNGKey(0)
    k_x, k_p = jax.random.split(key)
    params = make_params(k_p)

    # Small case plus a ragged-tail case (exercises the batch-tail pad path).
    for B in (8, 37):
        x = jax.random.normal(jax.random.fold_in(k_x, B), (B, IN_F), dtype=jnp.float32)
        out = student_o_forward(x, params)
        jax.block_until_ready(out)
        ref = _reference(x, params)
        assert out.shape == (B, 1)
        assert jnp.allclose(out, ref, atol=2e-3, rtol=2e-3), \
            float(jnp.max(jnp.abs(out - ref)))

    print("KERNEL_OK")
</pallas_src>

<mosaic_0001>
module attributes {stable_mosaic.version = 11 : i64} {
  func.func @mlp_kernel(%arg0: i32, %arg1: memref<16x100xf32, #tpu.memory_space<vmem>>, %arg2: memref<100x256xbf16, #tpu.memory_space<vmem>>, %arg3: memref<1x256xf32, #tpu.memory_space<vmem>>, %arg4: memref<256x256xbf16, #tpu.memory_space<vmem>>, %arg5: memref<1x256xf32, #tpu.memory_space<vmem>>, %arg6: memref<256x256xbf16, #tpu.memory_space<vmem>>, %arg7: memref<1x256xf32, #tpu.memory_space<vmem>>, %arg8: memref<256x128xbf16, #tpu.memory_space<vmem>>, %arg9: memref<1x128xf32, #tpu.memory_space<vmem>>, %arg10: memref<8x128xbf16, #tpu.memory_space<vmem>>, %arg11: memref<8x1xf32, #tpu.memory_space<vmem>>, %arg12: memref<8x16xf32, #tpu.memory_space<vmem>>) attributes {dimension_semantics = [#tpu.dimension_semantics<parallel>], iteration_bounds = array<i64: 1>, scalar_prefetch = 0 : i64, scratch_operands = 0 : i64, tpu.core_type = #tpu.core_type<tc>, window_params = [{transform_indices = @transform_0, window_bounds = array<i64: 16, 100>}, {pipeline_mode = #tpu.pipeline_mode<synchronous>, transform_indices = @transform_1, window_bounds = array<i64: 100, 256>}, {pipeline_mode = #tpu.pipeline_mode<synchronous>, transform_indices = @transform_2, window_bounds = array<i64: 1, 256>}, {pipeline_mode = #tpu.pipeline_mode<synchronous>, transform_indices = @transform_3, window_bounds = array<i64: 256, 256>}, {pipeline_mode = #tpu.pipeline_mode<synchronous>, transform_indices = @transform_4, window_bounds = array<i64: 1, 256>}, {pipeline_mode = #tpu.pipeline_mode<synchronous>, transform_indices = @transform_5, window_bounds = array<i64: 256, 256>}, {pipeline_mode = #tpu.pipeline_mode<synchronous>, transform_indices = @transform_6, window_bounds = array<i64: 1, 256>}, {pipeline_mode = #tpu.pipeline_mode<synchronous>, transform_indices = @transform_7, window_bounds = array<i64: 256, 128>}, {pipeline_mode = #tpu.pipeline_mode<synchronous>, transform_indices = @transform_8, window_bounds = array<i64: 1, 128>}, {pipeline_mode = #tpu.pipeline_mode<synchronous>, transform_indices = @transform_9, window_bounds = array<i64: 8, 128>}, {pipeline_mode = #tpu.pipeline_mode<synchronous>, transform_indices = @transform_10, window_bounds = array<i64: 8, 1>}, {transform_indices = @transform_11, window_bounds = array<i64: 8, 16>}]} {
    %c0 = arith.constant 0 : index
    %c0_0 = arith.constant 0 : index
    %0 = vector.load %arg1[%c0, %c0_0] : memref<16x100xf32, #tpu.memory_space<vmem>>, vector<16x100xf32>
    %1 = arith.truncf %0 : vector<16x100xf32> to vector<16x100xbf16>
    %c0_1 = arith.constant 0 : index
    %c0_2 = arith.constant 0 : index
    %2 = vector.load %arg2[%c0_1, %c0_2] : memref<100x256xbf16, #tpu.memory_space<vmem>>, vector<100x256xbf16>
    %cst = arith.constant dense<0.000000e+00> : vector<16x256xf32>
    %3 = tpu.matmul %1, %2, %cst {dimension_numbers = #tpu.dot_dimension_numbers<[1], [0], [0], [1], [0, 0, 1, 1], [], []>} : vector<16x100xbf16>, vector<100x256xbf16>, vector<16x256xf32> -> vector<16x256xf32>
    %c0_3 = arith.constant 0 : index
    %c0_4 = arith.constant 0 : index
    %4 = vector.load %arg3[%c0_3, %c0_4] : memref<1x256xf32, #tpu.memory_space<vmem>>, vector<1x256xf32>
    %5 = vector.broadcast %4 : vector<1x256xf32> to vector<16x256xf32>
    %6 = arith.addf %3, %5 : vector<16x256xf32>
    %cst_5 = arith.constant 0.000000e+00 : f32
    %7 = vector.broadcast %cst_5 : f32 to vector<16x256xf32>
    %8 = arith.maximumf %6, %7 : vector<16x256xf32>
    %9 = arith.truncf %8 : vector<16x256xf32> to vector<16x256xbf16>
    %c0_6 = arith.constant 0 : index
    %c0_7 = arith.constant 0 : index
    %10 = vector.load %arg4[%c0_6, %c0_7] : memref<256x256xbf16, #tpu.memory_space<vmem>>, vector<256x256xbf16>
    %cst_8 = arith.constant dense<0.000000e+00> : vector<16x256xf32>
    %11 = tpu.matmul %9, %10, %cst_8 {dimension_numbers = #tpu.dot_dimension_numbers<[1], [0], [0], [1], [0, 0, 1, 1], [], []>} : vector<16x256xbf16>, vector<256x256xbf16>, vector<16x256xf32> -> vector<16x256xf32>
    %c0_9 = arith.constant 0 : index
    %c0_10 = arith.constant 0 : index
    %12 = vector.load %arg5[%c0_9, %c0_10] : memref<1x256xf32, #tpu.memory_space<vmem>>, vector<1x256xf32>
    %13 = vector.broadcast %12 : vector<1x256xf32> to vector<16x256xf32>
    %14 = arith.addf %11, %13 : vector<16x256xf32>
    %cst_11 = arith.constant 0.000000e+00 : f32
    %15 = vector.broadcast %cst_11 : f32 to vector<16x256xf32>
    %16 = arith.maximumf %14, %15 : vector<16x256xf32>
    %17 = arith.truncf %16 : vector<16x256xf32> to vector<16x256xbf16>
    %c0_12 = arith.constant 0 : index
    %c0_13 = arith.constant 0 : index
    %18 = vector.load %arg6[%c0_12, %c0_13] : memref<256x256xbf16, #tpu.memory_space<vmem>>, vector<256x256xbf16>
    %cst_14 = arith.constant dense<0.000000e+00> : vector<16x256xf32>
    %19 = tpu.matmul %17, %18, %cst_14 {dimension_numbers = #tpu.dot_dimension_numbers<[1], [0], [0], [1], [0, 0, 1, 1], [], []>} : vector<16x256xbf16>, vector<256x256xbf16>, vector<16x256xf32> -> vector<16x256xf32>
    %c0_15 = arith.constant 0 : index
    %c0_16 = arith.constant 0 : index
    %20 = vector.load %arg7[%c0_15, %c0_16] : memref<1x256xf32, #tpu.memory_space<vmem>>, vector<1x256xf32>
    %21 = vector.broadcast %20 : vector<1x256xf32> to vector<16x256xf32>
    %22 = arith.addf %19, %21 : vector<16x256xf32>
    %cst_17 = arith.constant 0.000000e+00 : f32
    %23 = vector.broadcast %cst_17 : f32 to vector<16x256xf32>
    %24 = arith.maximumf %22, %23 : vector<16x256xf32>
    %25 = arith.truncf %24 : vector<16x256xf32> to vector<16x256xbf16>
    %c0_18 = arith.constant 0 : index
    %c0_19 = arith.constant 0 : index
    %26 = vector.load %arg8[%c0_18, %c0_19] : memref<256x128xbf16, #tpu.memory_space<vmem>>, vector<256x128xbf16>
    %cst_20 = arith.constant dense<0.000000e+00> : vector<16x128xf32>
    %27 = tpu.matmul %25, %26, %cst_20 {dimension_numbers = #tpu.dot_dimension_numbers<[1], [0], [0], [1], [0, 0, 1, 1], [], []>} : vector<16x256xbf16>, vector<256x128xbf16>, vector<16x128xf32> -> vector<16x128xf32>
    %c0_21 = arith.constant 0 : index
    %c0_22 = arith.constant 0 : index
    %28 = vector.load %arg9[%c0_21, %c0_22] : memref<1x128xf32, #tpu.memory_space<vmem>>, vector<1x128xf32>
    %29 = vector.broadcast %28 : vector<1x128xf32> to vector<16x128xf32>
    %30 = arith.addf %27, %29 : vector<16x128xf32>
    %cst_23 = arith.constant 0.000000e+00 : f32
    %31 = vector.broadcast %cst_23 : f32 to vector<16x128xf32>
    %32 = arith.maximumf %30, %31 : vector<16x128xf32>
    %33 = arith.truncf %32 : vector<16x128xf32> to vector<16x128xbf16>
    %c0_24 = arith.constant 0 : index
    %c0_25 = arith.constant 0 : index
    %34 = vector.load %arg10[%c0_24, %c0_25] : memref<8x128xbf16, #tpu.memory_space<vmem>>, vector<8x128xbf16>
    %35 = tpu.transpose %33, [1, 0] : vector<16x128xbf16> -> vector<128x16xbf16>
    %cst_26 = arith.constant dense<0.000000e+00> : vector<8x16xf32>
    %36 = tpu.matmul %34, %35, %cst_26 {dimension_numbers = #tpu.dot_dimension_numbers<[1], [0], [0], [1], [0, 0, 1, 1], [], []>} : vector<8x128xbf16>, vector<128x16xbf16>, vector<8x16xf32> -> vector<8x16xf32>
    %c0_27 = arith.constant 0 : index
    %c0_28 = arith.constant 0 : index
    %37 = vector.load %arg11[%c0_27, %c0_28] : memref<8x1xf32, #tpu.memory_space<vmem>>, vector<8x1xf32>
    %38 = vector.broadcast %37 : vector<8x1xf32> to vector<8x16xf32>
    %39 = arith.addf %36, %38 : vector<8x16xf32>
    %c0_29 = arith.constant 0 : index
    %c0_30 = arith.constant 0 : index
    %40 = vector.load %arg12[%c0_29, %c0_30] : memref<8x16xf32, #tpu.memory_space<vmem>>, vector<8x16xf32>
    tpu.vector_store %arg12[%c0_29, %c0_30], %39 {strides = array<i32>} : memref<8x16xf32, #tpu.memory_space<vmem>>, vector<8x16xf32>,
    return
  }
  func.func @transform_0(%arg0: i32) -> (i32, i32) {
    %c0_i32 = arith.constant 0 : i32
    %c0_i32_0 = arith.constant 0 : i32
    return %arg0, %c0_i32 : i32, i32
  }
  func.func @transform_1(%arg0: i32) -> (i32, i32) {
    %c0_i32 = arith.constant 0 : i32
    %c0_i32_0 = arith.constant 0 : i32
    %c0_i32_1 = arith.constant 0 : i32
    return %c0_i32, %c0_i32_0 : i32, i32
  }
  func.func @transform_2(%arg0: i32) -> (i32, i32) {
    %c0_i32 = arith.constant 0 : i32
    %c0_i32_0 = arith.constant 0 : i32
    %c0_i32_1 = arith.constant 0 : i32
    return %c0_i32, %c0_i32_0 : i32, i32
  }
  func.func @transform_3(%arg0: i32) -> (i32, i32) {
    %c0_i32 = arith.constant 0 : i32
    %c0_i32_0 = arith.constant 0 : i32
    %c0_i32_1 = arith.constant 0 : i32
    return %c0_i32, %c0_i32_0 : i32, i32
  }
  func.func @transform_4(%arg0: i32) -> (i32, i32) {
    %c0_i32 = arith.constant 0 : i32
    %c0_i32_0 = arith.constant 0 : i32
    %c0_i32_1 = arith.constant 0 : i32
    return %c0_i32, %c0_i32_0 : i32, i32
  }
  func.func @transform_5(%arg0: i32) -> (i32, i32) {
    %c0_i32 = arith.constant 0 : i32
    %c0_i32_0 = arith.constant 0 : i32
    %c0_i32_1 = arith.constant 0 : i32
    return %c0_i32, %c0_i32_0 : i32, i32
  }
  func.func @transform_6(%arg0: i32) -> (i32, i32) {
    %c0_i32 = arith.constant 0 : i32
    %c0_i32_0 = arith.constant 0 : i32
    %c0_i32_1 = arith.constant 0 : i32
    return %c0_i32, %c0_i32_0 : i32, i32
  }
  func.func @transform_7(%arg0: i32) -> (i32, i32) {
    %c0_i32 = arith.constant 0 : i32
    %c0_i32_0 = arith.constant 0 : i32
    %c0_i32_1 = arith.constant 0 : i32
    return %c0_i32, %c0_i32_0 : i32, i32
  }
  func.func @transform_8(%arg0: i32) -> (i32, i32) {
    %c0_i32 = arith.constant 0 : i32
    %c0_i32_0 = arith.constant 0 : i32
    %c0_i32_1 = arith.constant 0 : i32
    return %c0_i32, %c0_i32_0 : i32, i32
  }
  func.func @transform_9(%arg0: i32) -> (i32, i32) {
    %c0_i32 = arith.constant 0 : i32
    %c0_i32_0 = arith.constant 0 : i32
    %c0_i32_1 = arith.constant 0 : i32
    return %c0_i32, %c0_i32_0 : i32, i32
  }
  func.func @transform_10(%arg0: i32) -> (i32, i32) {
    %c0_i32 = arith.constant 0 : i32
    %c0_i32_0 = arith.constant 0 : i32
    %c0_i32_1 = arith.constant 0 : i32
    return %c0_i32, %c0_i32_0 : i32, i32
  }
  func.func @transform_11(%arg0: i32) -> (i32, i32) {
    %c0_i32 = arith.constant 0 : i32
    %c0_i32_0 = arith.constant 0 : i32
    return %c0_i32, %arg0 : i32, i32
  }
}

</mosaic_0001>

<llo_original>
// kernel: tpu_custom_call.1
$region0: #{tpu_custom_call.1}
  #allocation0 [shape = 'u32[]', space=smem, size = 0x4, offset = 0x4, fixed_abs, tag = 'smem constant byte address 0x4 - core index']
  #allocation1 [shape = 'u32[144,128]{1,0:T(1,128)}', space=vmem, size = 0x12000, scoped, tag = 'internal scratch']
  %s0 = inlined_call_operand.hbm [shape: f32[16,100], index: 0, kind: input, shape index: {}]
  %s1 = inlined_call_operand.hbm [shape: bf16[100,256], index: 1, kind: input, shape index: {}]
  %s2 = inlined_call_operand.vmem [shape: f32[1,256], index: 2, kind: input, shape index: {}]
  %s3 = inlined_call_operand.hbm [shape: bf16[256,256], index: 3, kind: input, shape index: {}]
  %s4 = inlined_call_operand.vmem [shape: f32[1,256], index: 4, kind: input, shape index: {}]
  %s5 = inlined_call_operand.hbm [shape: bf16[256,256], index: 5, kind: input, shape index: {}]
  %s6 = inlined_call_operand.vmem [shape: f32[1,256], index: 6, kind: input, shape index: {}]
  %s7 = inlined_call_operand.hbm [shape: bf16[256,128], index: 7, kind: input, shape index: {}]
  %s8 = inlined_call_operand.vmem [shape: f32[1,128], index: 8, kind: input, shape index: {}]
  %s9 = inlined_call_operand.vmem [shape: bf16[8,128], index: 9, kind: input, shape index: {}]
  %s10 = inlined_call_operand.vmem [shape: f32[8,1], index: 10, kind: input, shape index: {}]
  %s11 = inlined_call_operand.hbm [shape: f32[8,16], index: 11, kind: output, shape index: {}]
  %s12 = sld [smem:[#allocation0]]
  $region74: #{tpu_custom_call.1} parent=0
    _
  %s14 = ssub.s32 1, %s12
  %s15 = scalar_select 0, %s14, %s12
  $region1: #{tpu_custom_call.1} parent=0
    #allocation2 [shape = 'u8[8192]{0}', space=vmem, size = 0x2000, scoped, tag = 'input window, operand 0, single buffered']
    #allocation3 [shape = 's32[1]{0}', space=sflag, size = 0x4, scoped, tag = 'scoped memory for tpu_custom_call.1']
    #allocation4 [shape = 's32[1]{0}', space=sflag, size = 0x4, scoped, tag = 'scoped memory for tpu_custom_call.1']
    #allocation5 [shape = 'u8[53248]{0}', space=vmem, size = 0xd000, scoped, tag = 'input window, operand 1, single buffered']
    #allocation6 [shape = 's32[1]{0}', space=sflag, size = 0x4, scoped, tag = 'scoped memory for tpu_custom_call.1']
    #allocation7 [shape = 'u8[131072]{0}', space=vmem, size = 0x20000, scoped, tag = 'input window, operand 3, single buffered']
    #allocation8 [shape = 'u8[131072]{0}', space=vmem, size = 0x20000, scoped, tag = 'input window, operand 5, single buffered']
    #allocation9 [shape = 's32[1]{0}', space=sflag, size = 0x4, scoped, tag = 'scoped memory for tpu_custom_call.1']
    #allocation10 [shape = 'u8[65536]{0}', space=vmem, size = 0x10000, scoped, tag = 'input window, operand 7, single buffered']
    #allocation11 [shape = 'u8[4096]{0}', space=vmem, size = 0x1000, scoped, tag = 'output window, operand 0, single buffered']
    %16 = vsyncpa [#allocation3], 0
    %17 = vsyncpa [#allocation6], 0
    %18 = vsyncpa [#allocation9], 0
    %19 = vsyncpa [#allocation4], 0
    // Predicated region
    $region2: #{tpu_custom_call.1} parent=1 // pred_check
      _
    $region3: #{tpu_custom_call.1} parent=1 // pred_check_branch
      %21 = sbr.rel (0) target = $region5
    $region4: #{tpu_custom_call.1} parent=1 // pred_region
      %s23 = ssub.s32 256, 256
      %24 = vsyncadd [#allocation3], %s23
      %s25 = sshll.u32 [#allocation2], 4
      %s26 = int_to_ptr.vmem [resolvable:$true] %s25
      %31 = dma.hbm_to_vmem [thread:$0]  %s0, 256, %s26, [#allocation3], 128, 128, 8
    $region5: #{tpu_custom_call.1} parent=1 // pred_fallthru
      _
    // Predicated region
    $region6: #{tpu_custom_call.1} parent=1 // pred_check
      _
    $region7: #{tpu_custom_call.1} parent=1 // pred_check_branch
      %33 = sbr.rel (0) target = $region9
    $region8: #{tpu_custom_call.1} parent=1 // pred_region
      %s35 = ssub.s32 1664, 1664
      %36 = vsyncadd [#allocation6], %s35
      %s37 = sshll.u32 [#allocation5], 4
      %s38 = int_to_ptr.vmem [resolvable:$true] %s37
      %43 = dma.hbm_to_vmem [thread:$0]  %s1, 1664, %s38, [#allocation6], 128, 128, 8
    $region9: #{tpu_custom_call.1} parent=1 // pred_fallthru
      _
    // Predicated region
    $region10: #{tpu_custom_call.1} parent=1 // pred_check
      _
    $region11: #{tpu_custom_call.1} parent=1 // pred_check_branch
      %45 = sbr.rel (0) target = $region13
    $region12: #{tpu_custom_call.1} parent=1 // pred_region
      _
    $region13: #{tpu_custom_call.1} parent=1 // pred_fallthru
      _
    // Predicated region
    $region14: #{tpu_custom_call.1} parent=1 // pred_check
      _
    $region15: #{tpu_custom_call.1} parent=1 // pred_check_branch
      %47 = sbr.rel (0) target = $region17
    $region16: #{tpu_custom_call.1} parent=1 // pred_region
      %s49 = ssub.s32 4096, 4096
      %50 = vsyncadd [#allocation6], %s49
      %s51 = sshll.u32 [#allocation7], 4
      %s52 = int_to_ptr.vmem [resolvable:$true] %s51
      %57 = dma.hbm_to_vmem [thread:$0]  %s3, 4096, %s52, [#allocation6], 128, 128, 8
    $region17: #{tpu_custom_call.1} parent=1 // pred_fallthru
      _
    // Predicated region
    $region18: #{tpu_custom_call.1} parent=1 // pred_check
      _
    $region19: #{tpu_custom_call.1} parent=1 // pred_check_branch
      %59 = sbr.rel (0) target = $region21
    $region20: #{tpu_custom_call.1} parent=1 // pred_region
      _
    $region21: #{tpu_custom_call.1} parent=1 // pred_fallthru
      _
    // Predicated region
    $region22: #{tpu_custom_call.1} parent=1 // pred_check
      _
    $region23: #{tpu_custom_call.1} parent=1 // pred_check_branch
      %61 = sbr.rel (0) target = $region25
    $region24: #{tpu_custom_call.1} parent=1 // pred_region
      %s63 = ssub.s32 4096, 4096
      %64 = vsyncadd [#allocation9], %s63
      %s65 = sshll.u32 [#allocation8], 4
      %s66 = int_to_ptr.vmem [resolvable:$true] %s65
      %71 = dma.hbm_to_vmem [thread:$0]  %s5, 4096, %s66, [#allocation9], 128, 128, 8
    $region25: #{tpu_custom_call.1} parent=1 // pred_fallthru
      _
    // Predicated region
    $region26: #{tpu_custom_call.1} parent=1 // pred_check
      _
    $region27: #{tpu_custom_call.1} parent=1 // pred_check_branch
      %73 = sbr.rel (0) target = $region29
    $region28: #{tpu_custom_call.1} parent=1 // pred_region
      _
    $region29: #{tpu_custom_call.1} parent=1 // pred_fallthru
      _
    // Predicated region
    $region30: #{tpu_custom_call.1} parent=1 // pred_check
      _
    $region31: #{tpu_custom_call.1} parent=1 // pred_check_branch
      %75 = sbr.rel (0) target = $region33
    $region32: #{tpu_custom_call.1} parent=1 // pred_region
      %s77 = ssub.s32 2048, 2048
      %78 = vsyncadd [#allocation9], %s77
      %s79 = sshll.u32 [#allocation10], 4
      %s80 = int_to_ptr.vmem [resolvable:$true] %s79
      %85 = dma.hbm_to_vmem [thread:$0]  %s7, 2048, %s80, [#allocation9], 64, 64, 4
    $region33: #{tpu_custom_call.1} parent=1 // pred_fallthru
      _
    // Predicated region
    $region34: #{tpu_custom_call.1} parent=1 // pred_check
      _
    $region35: #{tpu_custom_call.1} parent=1 // pred_check_branch
      %87 = sbr.rel (0) target = $region37
    $region36: #{tpu_custom_call.1} parent=1 // pred_region
      _
    $region37: #{tpu_custom_call.1} parent=1 // pred_fallthru
      _
    // Predicated region
    $region38: #{tpu_custom_call.1} parent=1 // pred_check
      _
    $region39: #{tpu_custom_call.1} parent=1 // pred_check_branch
      %89 = sbr.rel (0) target = $region41
    $region40: #{tpu_custom_call.1} parent=1 // pred_region
      _
    $region41: #{tpu_custom_call.1} parent=1 // pred_fallthru
      _
    // Predicated region
    $region42: #{tpu_custom_call.1} parent=1 // pred_check
      _
    $region43: #{tpu_custom_call.1} parent=1 // pred_check_branch
      %91 = sbr.rel (0) target = $region45
    $region44: #{tpu_custom_call.1} parent=1 // pred_region
      _
    $region45: #{tpu_custom_call.1} parent=1 // pred_fallthru
      _
    // Predicated region
    $region46: #{tpu_custom_call.1} parent=1 // pred_check
      _
    $region47: #{tpu_custom_call.1} parent=1 // pred_check_branch
      %93 = sbr.rel (0) target = $region49
    $region48: #{tpu_custom_call.1} parent=1 // pred_region
      %94 = dma.done [#allocation3], 256
    $region49: #{tpu_custom_call.1} parent=1 // pred_fallthru
      _
    // Predicated region
    $region50: #{tpu_custom_call.1} parent=1 // pred_check
      _
    $region51: #{tpu_custom_call.1} parent=1 // pred_check_branch
      %96 = sbr.rel (0) target = $region53
    $region52: #{tpu_custom_call.1} parent=1 // pred_region
      %97 = dma.done [#allocation6], 1664
    $region53: #{tpu_custom_call.1} parent=1 // pred_fallthru
      _
    // Predicated region
    $region54: #{tpu_custom_call.1} parent=1 // pred_check
      _
    $region55: #{tpu_custom_call.1} parent=1 // pred_check_branch
      %99 = sbr.rel (0) target = $region57
    $region56: #{tpu_custom_call.1} parent=1 // pred_region
      %100 = dma.done [#allocation6], 4096
    $region57: #{tpu_custom_call.1} parent=1 // pred_fallthru
      _
    // Predicated region
    $region58: #{tpu_custom_call.1} parent=1 // pred_check
      _
    $region59: #{tpu_custom_call.1} parent=1 // pred_check_branch
      %102 = sbr.rel (0) target = $region61
    $region60: #{tpu_custom_call.1} parent=1 // pred_region
      %103 = dma.done [#allocation9], 4096
    $region61: #{tpu_custom_call.1} parent=1 // pred_fallthru
      _
    // Predicated region
    $region62: #{tpu_custom_call.1} parent=1 // pred_check
      _
    $region63: #{tpu_custom_call.1} parent=1 // pred_check_branch
      %105 = sbr.rel (0) target = $region65
    $region64: #{tpu_custom_call.1} parent=1 // pred_region
      %106 = dma.done [#allocation9], 2048
    $region65: #{tpu_custom_call.1} parent=1 // pred_fallthru
      _
    %v108 = vld [vmem:[#allocation2] sm:$0xff]
    %v109 = vld [vmem:[#allocation2 + $0x8] sm:$0xff]
    %v110 = vpack.c.bf16 %v109, %v108
    %v111 = vld [vmem:[#allocation5] sm:$0xff]
    %v112 = vld [vmem:[#allocation5 + $0x8] sm:$0xff]
    %v113 = vld [vmem:[#allocation5 + $0x10] sm:$0xff]
    %v114 = vld [vmem:[#allocation5 + $0x18] sm:$0xff]
    %v115 = vld [vmem:[#allocation5 + $0x20] sm:$0xff]
    %v116 = vld [vmem:[#allocation5 + $0x28] sm:$0xff]
    %v117 = vld [vmem:[#allocation5 + $0x30] sm:$0xff]
    %v118 = vld [vmem:[#allocation5 + $0x38] sm:$0xff]
    %v119 = vld [vmem:[#allocation5 + $0x40] sm:$0xff]
    %v120 = vld [vmem:[#allocation5 + $0x48] sm:$0xff]
    %v121 = vld [vmem:[#allocation5 + $0x50] sm:$0xff]
    %v122 = vld [vmem:[#allocation5 + $0x58] sm:$0xff]
    %v123 = vld [vmem:[#allocation5 + $0x60] sm:$0x33]
    %v124 = vld [vmem:[%s2] sm:$0x3]
    %v126 = vlaneseq
    %v127 = vshrl.u32 %v126, 7
    %v128 = vsub.s32 0, %v127
    %v129 = vrot.slane %v124, %v128
    %v130 = vlaneseq
    %v131 = vshrl.u32 %v130, 7
    %v132 = vsub.s32 1, %v131
    %v133 = vrot.slane %v124, %v132
    %v149 = vunpack.c.l.b16 %v111
    %v150 = vunpack.c.h.b16 %v111
    %v151 = vunpack.c.l.b16 %v112
    %v152 = vunpack.c.h.b16 %v112
    %v153 = vunpack.c.l.b16 %v113
    %v154 = vunpack.c.h.b16 %v113
    %v155 = vunpack.c.l.b16 %v114
    %v156 = vunpack.c.h.b16 %v114
    %v157 = vunpack.c.l.b16 %v115
    %v158 = vunpack.c.h.b16 %v115
    %v159 = vunpack.c.l.b16 %v116
    %v160 = vunpack.c.h.b16 %v116
    %v161 = vunpack.c.l.b16 %v117
    %v162 = vunpack.c.h.b16 %v117
    %v163 = vunpack.c.l.b16 %v118
    %v164 = vunpack.c.h.b16 %v118
    %v165 = vunpack.c.l.b16 %v119
    %v166 = vunpack.c.h.b16 %v119
    %v167 = vunpack.c.l.b16 %v120
    %v168 = vunpack.c.h.b16 %v120
    %v169 = vunpack.c.l.b16 %v121
    %v170 = vunpack.c.h.b16 %v121
    %v171 = vunpack.c.l.b16 %v122
    %v172 = vunpack.c.h.b16 %v122
    %v173 = vunpack.c.l.b16 %v123
    %v174 = vunpack.c.h.b16 %v123
    %v175 = vpack.c.b16 %v151, %v149
    %v176 = vpack.c.b16 %v152, %v150
    %v177 = vpack.c.b16 %v155, %v153
    %v178 = vpack.c.b16 %v156, %v154
    %v179 = vpack.c.b16 %v159, %v157
    %v180 = vpack.c.b16 %v160, %v158
    %v181 = vpack.c.b16 %v163, %v161
    %v182 = vpack.c.b16 %v164, %v162
    %v183 = vpack.c.b16 %v167, %v165
    %v184 = vpack.c.b16 %v168, %v166
    %v185 = vpack.c.b16 %v171, %v169
    %v186 = vpack.c.b16 %v172, %v170
    %v187 = vpack.c.b16 %v173, %v173
    %v188 = vpack.c.b16 %v174, %v174
    %vm201 = vcmask 818176
    %v203 = vsel %vm201, %v110, 0
    %vm205 = vcmask 1041408
    %v207 = vsel %vm205, %v187, 0
    %v210 = vsel %vm205, %v188, 0
    %212 = vmatprep.subr.bf16.mxu0 0
    %213 = vmatpush1.bf16.msra.mxu0 0
    %214 = vmatprep.subr.bf16.mxu0 %v210
    %215 = vmatpush1.bf16.msra.mxu0 %v207
    %216 = vmatprep.subr.bf16.mxu0 %v186
    %217 = vmatpush1.bf16.msra.mxu0 %v185
    %218 = vmatprep.subr.bf16.mxu0 %v184
    %219 = vmatpush1.bf16.msra.mxu0 %v183
    %220 = vmatprep.subr.bf16.mxu0 %v182
    %221 = vmatpush1.bf16.msra.mxu0 %v181
    %222 = vmatprep.subr.bf16.mxu0 %v180
    %223 = vmatpush1.bf16.msra.mxu0 %v179
    %224 = vmatprep.subr.bf16.mxu0 %v178
    %225 = vmatpush1.bf16.msra.mxu0 %v177
    %226 = vmatprep.subr.bf16.mxu0 %v176
    %227 = vmatpush1.bf16.msra.mxu0 %v175
    %228 = vmatprep.subr.bf16.mxu0 0
    %229 = vmatpush2.bf16.msra.mxu0 0
    %230 = vmatprep.subr.bf16.mxu0 0
    %231 = vmatpush2.bf16.msra.mxu0 0
    %232 = vmatprep.subr.bf16.mxu0 0
    %233 = vmatpush2.bf16.msra.mxu0 0
    %234 = vmatprep.subr.bf16.mxu0 0
    %235 = vmatpush2.bf16.msra.mxu0 0
    %236 = vmatprep.subr.bf16.mxu0 0
    %237 = vmatpush2.bf16.msra.mxu0 0
    %238 = vmatprep.subr.bf16.mxu0 0
    %239 = vmatpush2.bf16.msra.mxu0 0
    %240 = vmatprep.subr.bf16.mxu0 0
    %241 = vmatpush2.bf16.msra.mxu0 0
    %242 = vmatprep.subr.bf16.mxu0 0
    %243 = vmatpush2.bf16.msra.mxu0 0
    %244 = vmatprep.mubr.bf16.mxu0 0
    %245 = vmatmul.mubr.bf16.gmra.mxu0 %v203
    %v246 = vpop.f32.mrf.mxu0
    %v247 = vadd.f32 %v129, %v246
    %v248 = vpop.f32.mrf.mxu0
    %v249 = vadd.f32 %v133, %v248
    %v250 = vpop.f32.mrf.mxu0
    %v251 = vadd.f32 %v129, %v250
    %v252 = vpop.f32.mrf.mxu0
    %v253 = vadd.f32 %v133, %v252
    %254 = vdwg.mxu0
    %v255 = vmax.f32 %v247, 0.0
    %v256 = vmax.f32 %v249, 0.0
    %v257 = vmax.f32 %v251, 0.0
    %v258 = vmax.f32 %v253, 0.0
    %v259 = vpack.c.bf16 %v257, %v255
    %v260 = vpack.c.bf16 %v258, %v256
    %v261 = vld [vmem:[#allocation7] sm:$0xff]
    %v262 = vld [vmem:[#allocation7 + $0x8] sm:$0xff]
    %v263 = vld [vmem:[#allocation7 + $0x10] sm:$0xff]
    %v264 = vld [vmem:[#allocation7 + $0x18] sm:$0xff]
    %v265 = vld [vmem:[#allocation7 + $0x20] sm:$0xff]
    %v266 = vld [vmem:[#allocation7 + $0x28] sm:$0xff]
    %v267 = vld [vmem:[#allocation7 + $0x30] sm:$0xff]
    %v268 = vld [vmem:[#allocation7 + $0x38] sm:$0xff]
    %v269 = vld [vmem:[#allocation7 + $0x40] sm:$0xff]
    %v270 = vld [vmem:[#allocation7 + $0x48] sm:$0xff]
    %v271 = vld [vmem:[#allocation7 + $0x50] sm:$0xff]
    %v272 = vld [vmem:[#allocation7 + $0x58] sm:$0xff]
    %v273 = vld [vmem:[#allocation7 + $0x60] sm:$0xff]
    %v274 = vld [vmem:[#allocation7 + $0x68] sm:$0xff]
    %v275 = vld [vmem:[#allocation7 + $0x70] sm:$0xff]
    %v276 = vld [vmem:[#allocation7 + $0x78] sm:$0xff]
    %v277 = vld [vmem:[#allocation7 + $0x80] sm:$0xff]
    %v278 = vld [vmem:[#allocation7 + $0x88] sm:$0xff]
    %v279 = vld [vmem:[#allocation7 + $0x90] sm:$0xff]
    %v280 = vld [vmem:[#allocation7 + $0x98] sm:$0xff]
    %v281 = vld [vmem:[#allocation7 + $0xa0] sm:$0xff]
    %v282 = vld [vmem:[#allocation7 + $0xa8] sm:$0xff]
    %v283 = vld [vmem:[#allocation7 + $0xb0] sm:$0xff]
    %v284 = vld [vmem:[#allocation7 + $0xb8] sm:$0xff]
    %v285 = vld [vmem:[#allocation7 + $0xc0] sm:$0xff]
    %v286 = vld [vmem:[#allocation7 + $0xc8] sm:$0xff]
    %v287 = vld [vmem:[#allocation7 + $0xd0] sm:$0xff]
    %v288 = vld [vmem:[#allocation7 + $0xd8] sm:$0xff]
    %v289 = vld [vmem:[#allocation7 + $0xe0] sm:$0xff]
    %v290 = vld [vmem:[#allocation7 + $0xe8] sm:$0xff]
    %v291 = vld [vmem:[#allocation7 + $0xf0] sm:$0xff]
    %v292 = vld [vmem:[#allocation7 + $0xf8] sm:$0xff]
    %v293 = vld [vmem:[%s4] sm:$0x3]
    %v295 = vlaneseq
    %v296 = vshrl.u32 %v295, 7
    %v297 = vsub.s32 0, %v296
    %v298 = vrot.slane %v293, %v297
    %v299 = vlaneseq
    %v300 = vshrl.u32 %v299, 7
    %v301 = vsub.s32 1, %v300
    %v302 = vrot.slane %v293, %v301
    %v337 = vunpack.c.l.b16 %v261
    %v338 = vunpack.c.h.b16 %v261
    %v339 = vunpack.c.l.b16 %v262
    %v340 = vunpack.c.h.b16 %v262
    %v341 = vunpack.c.l.b16 %v263
    %v342 = vunpack.c.h.b16 %v263
    %v343 = vunpack.c.l.b16 %v264
    %v344 = vunpack.c.h.b16 %v264
    %v345 = vunpack.c.l.b16 %v265
    %v346 = vunpack.c.h.b16 %v265
    %v347 = vunpack.c.l.b16 %v266
    %v348 = vunpack.c.h.b16 %v266
    %v349 = vunpack.c.l.b16 %v267
    %v350 = vunpack.c.h.b16 %v267
    %v351 = vunpack.c.l.b16 %v268
    %v352 = vunpack.c.h.b16 %v268
    %v353 = vunpack.c.l.b16 %v269
    %v354 = vunpack.c.h.b16 %v269
    %v355 = vunpack.c.l.b16 %v270
    %v356 = vunpack.c.h.b16 %v270
    %v357 = vunpack.c.l.b16 %v271
    %v358 = vunpack.c.h.b16 %v271
    %v359 = vunpack.c.l.b16 %v272
    %v360 = vunpack.c.h.b16 %v272
    %v361 = vunpack.c.l.b16 %v273
    %v362 = vunpack.c.h.b16 %v273
    %v363 = vunpack.c.l.b16 %v274
    %v364 = vunpack.c.h.b16 %v274
    %v365 = vunpack.c.l.b16 %v275
    %v366 = vunpack.c.h.b16 %v275
    %v367 = vunpack.c.l.b16 %v276
    %v368 = vunpack.c.h.b16 %v276
    %v369 = vunpack.c.l.b16 %v277
    %v370 = vunpack.c.h.b16 %v277
    %v371 = vunpack.c.l.b16 %v278
    %v372 = vunpack.c.h.b16 %v278
    %v373 = vunpack.c.l.b16 %v279
    %v374 = vunpack.c.h.b16 %v279
    %v375 = vunpack.c.l.b16 %v280
    %v376 = vunpack.c.h.b16 %v280
    %v377 = vunpack.c.l.b16 %v281
    %v378 = vunpack.c.h.b16 %v281
    %v379 = vunpack.c.l.b16 %v282
    %v380 = vunpack.c.h.b16 %v282
    %v381 = vunpack.c.l.b16 %v283
    %v382 = vunpack.c.h.b16 %v283
    %v383 = vunpack.c.l.b16 %v284
    %v384 = vunpack.c.h.b16 %v284
    %v385 = vunpack.c.l.b16 %v285
    %v386 = vunpack.c.h.b16 %v285
    %v387 = vunpack.c.l.b16 %v286
    %v388 = vunpack.c.h.b16 %v286
    %v389 = vunpack.c.l.b16 %v287
    %v390 = vunpack.c.h.b16 %v287
    %v391 = vunpack.c.l.b16 %v288
    %v392 = vunpack.c.h.b16 %v288
    %v393 = vunpack.c.l.b16 %v289
    %v394 = vunpack.c.h.b16 %v289
    %v395 = vunpack.c.l.b16 %v290
    %v396 = vunpack.c.h.b16 %v290
    %v397 = vunpack.c.l.b16 %v291
    %v398 = vunpack.c.h.b16 %v291
    %v399 = vunpack.c.l.b16 %v292
    %v400 = vunpack.c.h.b16 %v292
    %v401 = vpack.c.b16 %v339, %v337
    %v402 = vpack.c.b16 %v340, %v338
    %v403 = vpack.c.b16 %v343, %v341
    %v404 = vpack.c.b16 %v344, %v342
    %v405 = vpack.c.b16 %v347, %v345
    %v406 = vpack.c.b16 %v348, %v346
    %v407 = vpack.c.b16 %v351, %v349
    %v408 = vpack.c.b16 %v352, %v350
    %v409 = vpack.c.b16 %v355, %v353
    %v410 = vpack.c.b16 %v356, %v354
    %v411 = vpack.c.b16 %v359, %v357
    %v412 = vpack.c.b16 %v360, %v358
    %v413 = vpack.c.b16 %v363, %v361
    %v414 = vpack.c.b16 %v364, %v362
    %v415 = vpack.c.b16 %v367, %v365
    %v416 = vpack.c.b16 %v368, %v366
    %v417 = vpack.c.b16 %v371, %v369
    %v418 = vpack.c.b16 %v372, %v370
    %v419 = vpack.c.b16 %v375, %v373
    %v420 = vpack.c.b16 %v376, %v374
    %v421 = vpack.c.b16 %v379, %v377
    %v422 = vpack.c.b16 %v380, %v378
    %v423 = vpack.c.b16 %v383, %v381
    %v424 = vpack.c.b16 %v384, %v382
    %v425 = vpack.c.b16 %v387, %v385
    %v426 = vpack.c.b16 %v388, %v386
    %v427 = vpack.c.b16 %v391, %v389
    %v428 = vpack.c.b16 %v392, %v390
    %v429 = vpack.c.b16 %v395, %v393
    %v430 = vpack.c.b16 %v396, %v394
    %v431 = vpack.c.b16 %v399, %v397
    %v432 = vpack.c.b16 %v400, %v398
    %465 = vmatprep.subr.bf16.mxu0 %v416
    %466 = vmatpush1.bf16.msra.mxu0 %v415
    %467 = vmatprep.subr.bf16.mxu0 %v414
    %468 = vmatpush1.bf16.msra.mxu0 %v413
    %469 = vmatprep.subr.bf16.mxu0 %v412
    %470 = vmatpush1.bf16.msra.mxu0 %v411
    %471 = vmatprep.subr.bf16.mxu0 %v410
    %472 = vmatpush1.bf16.msra.mxu0 %v409
    %473 = vmatprep.subr.bf16.mxu0 %v408
    %474 = vmatpush1.bf16.msra.mxu0 %v407
    %475 = vmatprep.subr.bf16.mxu0 %v406
    %476 = vmatpush1.bf16.msra.mxu0 %v405
    %477 = vmatprep.subr.bf16.mxu0 %v404
    %478 = vmatpush1.bf16.msra.mxu0 %v403
    %479 = vmatprep.subr.bf16.mxu0 %v402
    %480 = vmatpush1.bf16.msra.mxu0 %v401
    %481 = vmatprep.subr.bf16.mxu0 %v432
    %482 = vmatpush2.bf16.msra.mxu0 %v431
    %483 = vmatprep.subr.bf16.mxu0 %v430
    %484 = vmatpush2.bf16.msra.mxu0 %v429
    %485 = vmatprep.subr.bf16.mxu0 %v428
    %486 = vmatpush2.bf16.msra.mxu0 %v427
    %487 = vmatprep.subr.bf16.mxu0 %v426
    %488 = vmatpush2.bf16.msra.mxu0 %v425
    %489 = vmatprep.subr.bf16.mxu0 %v424
    %490 = vmatpush2.bf16.msra.mxu0 %v423
    %491 = vmatprep.subr.bf16.mxu0 %v422
    %492 = vmatpush2.bf16.msra.mxu0 %v421
    %493 = vmatprep.subr.bf16.mxu0 %v420
    %494 = vmatpush2.bf16.msra.mxu0 %v419
    %495 = vmatprep.subr.bf16.mxu0 %v418
    %496 = vmatpush2.bf16.msra.mxu0 %v417
    %497 = vmatprep.mubr.bf16.mxu0 %v260
    %498 = vmatmul.mubr.bf16.gmra.mxu0 %v259
    %v499 = vpop.f32.mrf.mxu0
    %v500 = vadd.f32 %v298, %v499
    %v501 = vpop.f32.mrf.mxu0
    %v502 = vadd.f32 %v302, %v501
    %v503 = vpop.f32.mrf.mxu0
    %v504 = vadd.f32 %v298, %v503
    %v505 = vpop.f32.mrf.mxu0
    %v506 = vadd.f32 %v302, %v505
    %507 = vdwg.mxu0
    %v508 = vmax.f32 %v500, 0.0
    %v509 = vmax.f32 %v502, 0.0
    %v510 = vmax.f32 %v504, 0.0
    %v511 = vmax.f32 %v506, 0.0
    %v512 = vpack.c.bf16 %v510, %v508
    %v513 = vpack.c.bf16 %v511, %v509
    %v514 = vld [vmem:[#allocation8] sm:$0xff]
    %v515 = vld [vmem:[#allocation8 + $0x8] sm:$0xff]
    %v516 = vld [vmem:[#allocation8 + $0x10] sm:$0xff]
    %v517 = vld [vmem:[#allocation8 + $0x18] sm:$0xff]
    %v518 = vld [vmem:[#allocation8 + $0x20] sm:$0xff]
    %v519 = vld [vmem:[#allocation8 + $0x28] sm:$0xff]
    %v520 = vld [vmem:[#allocation8 + $0x30] sm:$0xff]
    %v521 = vld [vmem:[#allocation8 + $0x38] sm:$0xff]
    %v522 = vld [vmem:[#allocation8 + $0x40] sm:$0xff]
    %v523 = vld [vmem:[#allocation8 + $0x48] sm:$0xff]
    %v524 = vld [vmem:[#allocation8 + $0x50] sm:$0xff]
    %v525 = vld [vmem:[#allocation8 + $0x58] sm:$0xff]
    %v526 = vld [vmem:[#allocation8 + $0x60] sm:$0xff]
    %v527 = vld [vmem:[#allocation8 + $0x68] sm:$0xff]
    %v528 = vld [vmem:[#allocation8 + $0x70] sm:$0xff]
    %v529 = vld [vmem:[#allocation8 + $0x78] sm:$0xff]
    %v530 = vld [vmem:[#allocation8 + $0x80] sm:$0xff]
    %v531 = vld [vmem:[#allocation8 + $0x88] sm:$0xff]
    %v532 = vld [vmem:[#allocation8 + $0x90] sm:$0xff]
    %v533 = vld [vmem:[#allocation8 + $0x98] sm:$0xff]
    %v534 = vld [vmem:[#allocation8 + $0xa0] sm:$0xff]
    %v535 = vld [vmem:[#allocation8 + $0xa8] sm:$0xff]
    %v536 = vld [vmem:[#allocation8 + $0xb0] sm:$0xff]
    %v537 = vld [vmem:[#allocation8 + $0xb8] sm:$0xff]
    %v538 = vld [vmem:[#allocation8 + $0xc0] sm:$0xff]
    %v539 = vld [vmem:[#allocation8 + $0xc8] sm:$0xff]
    %v540 = vld [vmem:[#allocation8 + $0xd0] sm:$0xff]
    %v541 = vld [vmem:[#allocation8 + $0xd8] sm:$0xff]
    %v542 = vld [vmem:[#allocation8 + $0xe0] sm:$0xff]
    %v543 = vld [vmem:[#allocation8 + $0xe8] sm:$0xff]
    %v544 = vld [vmem:[#allocation8 + $0xf0] sm:$0xff]
    %v545 = vld [vmem:[#allocation8 + $0xf8] sm:$0xff]
    %v546 = vld [vmem:[%s6] sm:$0x3]
    %v548 = vlaneseq
    %v549 = vshrl.u32 %v548, 7
    %v550 = vsub.s32 0, %v549
    %v551 = vrot.slane %v546, %v550
    %v552 = vlaneseq
    %v553 = vshrl.u32 %v552, 7
    %v554 = vsub.s32 1, %v553
    %v555 = vrot.slane %v546, %v554
    %v590 = vunpack.c.l.b16 %v514
    %v591 = vunpack.c.h.b16 %v514
    %v592 = vunpack.c.l.b16 %v515
    %v593 = vunpack.c.h.b16 %v515
    %v594 = vunpack.c.l.b16 %v516
    %v595 = vunpack.c.h.b16 %v516
    %v596 = vunpack.c.l.b16 %v517
    %v597 = vunpack.c.h.b16 %v517
    %v598 = vunpack.c.l.b16 %v518
    %v599 = vunpack.c.h.b16 %v518
    %v600 = vunpack.c.l.b16 %v519
    %v601 = vunpack.c.h.b16 %v519
    %v602 = vunpack.c.l.b16 %v520
    %v603 = vunpack.c.h.b16 %v520
    %v604 = vunpack.c.l.b16 %v521
    %v605 = vunpack.c.h.b16 %v521
    %v606 = vunpack.c.l.b16 %v522
    %v607 = vunpack.c.h.b16 %v522
    %v608 = vunpack.c.l.b16 %v523
    %v609 = vunpack.c.h.b16 %v523
    %v610 = vunpack.c.l.b16 %v524
    %v611 = vunpack.c.h.b16 %v524
    %v612 = vunpack.c.l.b16 %v525
    %v613 = vunpack.c.h.b16 %v525
    %v614 = vunpack.c.l.b16 %v526
    %v615 = vunpack.c.h.b16 %v526
    %v616 = vunpack.c.l.b16 %v527
    %v617 = vunpack.c.h.b16 %v527
    %v618 = vunpack.c.l.b16 %v528
    %v619 = vunpack.c.h.b16 %v528
    %v620 = vunpack.c.l.b16 %v529
    %v621 = vunpack.c.h.b16 %v529
    %v622 = vunpack.c.l.b16 %v530
    %v623 = vunpack.c.h.b16 %v530
    %v624 = vunpack.c.l.b16 %v531
    %v625 = vunpack.c.h.b16 %v531
    %v626 = vunpack.c.l.b16 %v532
    %v627 = vunpack.c.h.b16 %v532
    %v628 = vunpack.c.l.b16 %v533
    %v629 = vunpack.c.h.b16 %v533
    %v630 = vunpack.c.l.b16 %v534
    %v631 = vunpack.c.h.b16 %v534
    %v632 = vunpack.c.l.b16 %v535
    %v633 = vunpack.c.h.b16 %v535
    %v634 = vunpack.c.l.b16 %v536
    %v635 = vunpack.c.h.b16 %v536
    %v636 = vunpack.c.l.b16 %v537
    %v637 = vunpack.c.h.b16 %v537
    %v638 = vunpack.c.l.b16 %v538
    %v639 = vunpack.c.h.b16 %v538
    %v640 = vunpack.c.l.b16 %v539
    %v641 = vunpack.c.h.b16 %v539
    %v642 = vunpack.c.l.b16 %v540
    %v643 = vunpack.c.h.b16 %v540
    %v644 = vunpack.c.l.b16 %v541
    %v645 = vunpack.c.h.b16 %v541
    %v646 = vunpack.c.l.b16 %v542
    %v647 = vunpack.c.h.b16 %v542
    %v648 = vunpack.c.l.b16 %v543
    %v649 = vunpack.c.h.b16 %v543
    %v650 = vunpack.c.l.b16 %v544
    %v651 = vunpack.c.h.b16 %v544
    %v652 = vunpack.c.l.b16 %v545
    %v653 = vunpack.c.h.b16 %v545
    %v654 = vpack.c.b16 %v592, %v590
    %v655 = vpack.c.b16 %v593, %v591
    %v656 = vpack.c.b16 %v596, %v594
    %v657 = vpack.c.b16 %v597, %v595
    %v658 = vpack.c.b16 %v600, %v598
    %v659 = vpack.c.b16 %v601, %v599
    %v660 = vpack.c.b16 %v604, %v602
    %v661 = vpack.c.b16 %v605, %v603
    %v662 = vpack.c.b16 %v608, %v606
    %v663 = vpack.c.b16 %v609, %v607
    %v664 = vpack.c.b16 %v612, %v610
    %v665 = vpack.c.b16 %v613, %v611
    %v666 = vpack.c.b16 %v616, %v614
    %v667 = vpack.c.b16 %v617, %v615
    %v668 = vpack.c.b16 %v620, %v618
    %v669 = vpack.c.b16 %v621, %v619
    %v670 = vpack.c.b16 %v624, %v622
    %v671 = vpack.c.b16 %v625, %v623
    %v672 = vpack.c.b16 %v628, %v626
    %v673 = vpack.c.b16 %v629, %v627
    %v674 = vpack.c.b16 %v632, %v630
    %v675 = vpack.c.b16 %v633, %v631
    %v676 = vpack.c.b16 %v636, %v634
    %v677 = vpack.c.b16 %v637, %v635
    %v678 = vpack.c.b16 %v640, %v638
    %v679 = vpack.c.b16 %v641, %v639
    %v680 = vpack.c.b16 %v644, %v642
    %v681 = vpack.c.b16 %v645, %v643
    %v682 = vpack.c.b16 %v648, %v646
    %v683 = vpack.c.b16 %v649, %v647
    %v684 = vpack.c.b16 %v652, %v650
    %v685 = vpack.c.b16 %v653, %v651
    %718 = vmatprep.subr.bf16.mxu0 %v669
    %719 = vmatpush1.bf16.msra.mxu0 %v668
    %720 = vmatprep.subr.bf16.mxu0 %v667
    %721 = vmatpush1.bf16.msra.mxu0 %v666
    %722 = vmatprep.subr.bf16.mxu0 %v665
    %723 = vmatpush1.bf16.msra.mxu0 %v664
    %724 = vmatprep.subr.bf16.mxu0 %v663
    %725 = vmatpush1.bf16.msra.mxu0 %v662
    %726 = vmatprep.subr.bf16.mxu0 %v661
    %727 = vmatpush1.bf16.msra.mxu0 %v660
    %728 = vmatprep.subr.bf16.mxu0 %v659
    %729 = vmatpush1.bf16.msra.mxu0 %v658
    %730 = vmatprep.subr.bf16.mxu0 %v657
    %731 = vmatpush1.bf16.msra.mxu0 %v656
    %732 = vmatprep.subr.bf16.mxu0 %v655
    %733 = vmatpush1.bf16.msra.mxu0 %v654
    %734 = vmatprep.subr.bf16.mxu0 %v685
    %735 = vmatpush2.bf16.msra.mxu0 %v684
    %736 = vmatprep.subr.bf16.mxu0 %v683
    %737 = vmatpush2.bf16.msra.mxu0 %v682
    %738 = vmatprep.subr.bf16.mxu0 %v681
    %739 = vmatpush2.bf16.msra.mxu0 %v680
    %740 = vmatprep.subr.bf16.mxu0 %v679
    %741 = vmatpush2.bf16.msra.mxu0 %v678
    %742 = vmatprep.subr.bf16.mxu0 %v677
    %743 = vmatpush2.bf16.msra.mxu0 %v676
    %744 = vmatprep.subr.bf16.mxu0 %v675
    %745 = vmatpush2.bf16.msra.mxu0 %v674
    %746 = vmatprep.subr.bf16.mxu0 %v673
    %747 = vmatpush2.bf16.msra.mxu0 %v672
    %748 = vmatprep.subr.bf16.mxu0 %v671
    %749 = vmatpush2.bf16.msra.mxu0 %v670
    %750 = vmatprep.mubr.bf16.mxu0 %v513
    %751 = vmatmul.mubr.bf16.gmra.mxu0 %v512
    %v752 = vpop.f32.mrf.mxu0
    %v753 = vadd.f32 %v551, %v752
    %v754 = vpop.f32.mrf.mxu0
    %v755 = vadd.f32 %v555, %v754
    %v756 = vpop.f32.mrf.mxu0
    %v757 = vadd.f32 %v551, %v756
    %v758 = vpop.f32.mrf.mxu0
    %v759 = vadd.f32 %v555, %v758
    %760 = vdwg.mxu0
    %v761 = vmax.f32 %v753, 0.0
    %v762 = vmax.f32 %v755, 0.0
    %v763 = vmax.f32 %v757, 0.0
    %v764 = vmax.f32 %v759, 0.0
    %v765 = vpack.c.bf16 %v763, %v761
    %v766 = vpack.c.bf16 %v764, %v762
    %v767 = vld [vmem:[#allocation10] sm:$0xf]
    %v768 = vld [vmem:[#allocation10 + $0x4] sm:$0xf]
    %v769 = vld [vmem:[#allocation10 + $0x8] sm:$0xf]
    %v770 = vld [vmem:[#allocation10 + $0xc] sm:$0xf]
    %v771 = vld [vmem:[#allocation10 + $0x10] sm:$0xf]
    %v772 = vld [vmem:[#allocation10 + $0x14] sm:$0xf]
    %v773 = vld [vmem:[#allocation10 + $0x18] sm:$0xf]
    %v774 = vld [vmem:[#allocation10 + $0x1c] sm:$0xf]
    %v775 = vld [vmem:[#allocation10 + $0x20] sm:$0xf]
    %v776 = vld [vmem:[#allocation10 + $0x24] sm:$0xf]
    %v777 = vld [vmem:[#allocation10 + $0x28] sm:$0xf]
    %v778 = vld [vmem:[#allocation10 + $0x2c] sm:$0xf]
    %v779 = vld [vmem:[#allocation10 + $0x30] sm:$0xf]
    %v780 = vld [vmem:[#allocation10 + $0x34] sm:$0xf]
    %v781 = vld [vmem:[#allocation10 + $0x38] sm:$0xf]
    %v782 = vld [vmem:[#allocation10 + $0x3c] sm:$0xf]
    %v783 = vld [vmem:[#allocation10 + $0x40] sm:$0xf]
    %v784 = vld [vmem:[#allocation10 + $0x44] sm:$0xf]
    %v785 = vld [vmem:[#allocation10 + $0x48] sm:$0xf]
    %v786 = vld [vmem:[#allocation10 + $0x4c] sm:$0xf]
    %v787 = vld [vmem:[#allocation10 + $0x50] sm:$0xf]
    %v788 = vld [vmem:[#allocation10 + $0x54] sm:$0xf]
    %v789 = vld [vmem:[#allocation10 + $0x58] sm:$0xf]
    %v790 = vld [vmem:[#allocation10 + $0x5c] sm:$0xf]
    %v791 = vld [vmem:[#allocation10 + $0x60] sm:$0xf]
    %v792 = vld [vmem:[#allocation10 + $0x64] sm:$0xf]
    %v793 = vld [vmem:[#allocation10 + $0x68] sm:$0xf]
    %v794 = vld [vmem:[#allocation10 + $0x6c] sm:$0xf]
    %v795 = vld [vmem:[#allocation10 + $0x70] sm:$0xf]
    %v796 = vld [vmem:[#allocation10 + $0x74] sm:$0xf]
    %v797 = vld [vmem:[#allocation10 + $0x78] sm:$0xf]
    %v798 = vld [vmem:[#allocation10 + $0x7c] sm:$0xf]
    %v799 = vld [vmem:[%s8] sm:$0x1]
    %v801 = vlaneseq
    %v802 = vshrl.u32 %v801, 7
    %v803 = vsub.s32 0, %v802
    %v804 = vrot.slane %v799, %v803
    %v838 = vunpack.c.l.b16 %v767
    %v839 = vunpack.c.l.b16 %v768
    %v840 = vunpack.c.l.b16 %v769
    %v841 = vunpack.c.l.b16 %v770
    %v842 = vunpack.c.l.b16 %v771
    %v843 = vunpack.c.l.b16 %v772
    %v844 = vunpack.c.l.b16 %v773
    %v845 = vunpack.c.l.b16 %v774
    %v846 = vunpack.c.l.b16 %v775
    %v847 = vunpack.c.l.b16 %v776
    %v848 = vunpack.c.l.b16 %v777
    %v849 = vunpack.c.l.b16 %v778
    %v850 = vunpack.c.l.b16 %v779
    %v851 = vunpack.c.l.b16 %v780
    %v852 = vunpack.c.l.b16 %v781
    %v853 = vunpack.c.l.b16 %v782
    %v854 = vunpack.c.l.b16 %v783
    %v855 = vunpack.c.l.b16 %v784
    %v856 = vunpack.c.l.b16 %v785
    %v857 = vunpack.c.l.b16 %v786
    %v858 = vunpack.c.l.b16 %v787
    %v859 = vunpack.c.l.b16 %v788
    %v860 = vunpack.c.l.b16 %v789
    %v861 = vunpack.c.l.b16 %v790
    %v862 = vunpack.c.l.b16 %v791
    %v863 = vunpack.c.l.b16 %v792
    %v864 = vunpack.c.l.b16 %v793
    %v865 = vunpack.c.l.b16 %v794
    %v866 = vunpack.c.l.b16 %v795
    %v867 = vunpack.c.l.b16 %v796
    %v868 = vunpack.c.l.b16 %v797
    %v869 = vunpack.c.l.b16 %v798
    %v870 = vpack.c.b16 %v839, %v838
    %v871 = vpack.c.b16 %v841, %v840
    %v872 = vpack.c.b16 %v843, %v842
    %v873 = vpack.c.b16 %v845, %v844
    %v874 = vpack.c.b16 %v847, %v846
    %v875 = vpack.c.b16 %v849, %v848
    %v876 = vpack.c.b16 %v851, %v850
    %v877 = vpack.c.b16 %v853, %v852
    %v878 = vpack.c.b16 %v855, %v854
    %v879 = vpack.c.b16 %v857, %v856
    %v880 = vpack.c.b16 %v859, %v858
    %v881 = vpack.c.b16 %v861, %v860
    %v882 = vpack.c.b16 %v863, %v862
    %v883 = vpack.c.b16 %v865, %v864
    %v884 = vpack.c.b16 %v867, %v866
    %v885 = vpack.c.b16 %v869, %v868
    %902 = vmatprep.subr.bf16.mxu0 0
    %903 = vmatpush1.bf16.msra.mxu0 %v877
    %904 = vmatprep.subr.bf16.mxu0 0
    %905 = vmatpush1.bf16.msra.mxu0 %v876
    %906 = vmatprep.subr.bf16.mxu0 0
    %907 = vmatpush1.bf16.msra.mxu0 %v875
    %908 = vmatprep.subr.bf16.mxu0 0
    %909 = vmatpush1.bf16.msra.mxu0 %v874
    %910 = vmatprep.subr.bf16.mxu0 0
    %911 = vmatpush1.bf16.msra.mxu0 %v873
    %912 = vmatprep.subr.bf16.mxu0 0
    %913 = vmatpush1.bf16.msra.mxu0 %v872
    %914 = vmatprep.subr.bf16.mxu0 0
    %915 = vmatpush1.bf16.msra.mxu0 %v871
    %916 = vmatprep.subr.bf16.mxu0 0
    %917 = vmatpush1.bf16.msra.mxu0 %v870
    %918 = vmatprep.subr.bf16.mxu0 0
    %919 = vmatpush2.bf16.msra.mxu0 %v885
    %920 = vmatprep.subr.bf16.mxu0 0
    %921 = vmatpush2.bf16.msra.mxu0 %v884
    %922 = vmatprep.subr.bf16.mxu0 0
    %923 = vmatpush2.bf16.msra.mxu0 %v883
    %924 = vmatprep.subr.bf16.mxu0 0
    %925 = vmatpush2.bf16.msra.mxu0 %v882
    %926 = vmatprep.subr.bf16.mxu0 0
    %927 = vmatpush2.bf16.msra.mxu0 %v881
    %928 = vmatprep.subr.bf16.mxu0 0
    %929 = vmatpush2.bf16.msra.mxu0 %v880
    %930 = vmatprep.subr.bf16.mxu0 0
    %931 = vmatpush2.bf16.msra.mxu0 %v879
    %932 = vmatprep.subr.bf16.mxu0 0
    %933 = vmatpush2.bf16.msra.mxu0 %v878
    %934 = vmatprep.mubr.bf16.mxu0 %v766
    %935 = vmatmul.mubr.bf16.gmra.mxu0 %v765
    %v936 = vpop.f32.mrf.mxu0
    %v937 = vadd.f32 %v804, %v936
    %v938 = vpop.f32.mrf.mxu0
    %v939 = vpop.f32.mrf.mxu0
    %v940 = vadd.f32 %v804, %v939
    %v941 = vpop.f32.mrf.mxu0
    %942 = vdwg.mxu0
    %v943 = vmax.f32 %v937, 0.0
    %v944 = vmax.f32 %v940, 0.0
    %v945 = vpack.c.bf16 %v944, %v943
    %v946 = vld [vmem:[%s9] sm:$0xf]
    %v947 = vld [vmem:[%s10] sm:$0xff]
    %949 = vset.pattern.permute.xlu0 0
    %950 = vperm.xlu0 %949, %v947
    %v951 = vpop.permute.xlu0 %950
    %953 = vmatprep.subr.bf16.mxu0 0
    %954 = vmatpush1.bf16.xpose.msra.mxu0 0
    %955 = vmatprep.subr.bf16.mxu0 0
    %956 = vmatpush1.bf16.xpose.msra.mxu0 0
    %957 = vmatprep.subr.bf16.mxu0 0
    %958 = vmatpush1.bf16.xpose.msra.mxu0 0
    %959 = vmatprep.subr.bf16.mxu0 0
    %960 = vmatpush1.bf16.xpose.msra.mxu0 0
    %961 = vmatprep.subr.bf16.mxu0 0
    %962 = vmatpush1.bf16.xpose.msra.mxu0 0
    %963 = vmatprep.subr.bf16.mxu0 0
    %964 = vmatpush1.bf16.xpose.msra.mxu0 0
    %965 = vmatprep.subr.bf16.mxu0 0
    %966 = vmatpush1.bf16.xpose.msra.mxu0 0
    %967 = vmatprep.subr.bf16.mxu0 0
    %968 = vmatpush1.bf16.xpose.msra.mxu0 %v945
    %969 = vmatprep.subr.bf16.mxu0 0
    %970 = vmatpush2.bf16.xpose.msra.mxu0 0
    %971 = vmatprep.subr.bf16.mxu0 0
    %972 = vmatpush2.bf16.xpose.msra.mxu0 0
    %973 = vmatprep.subr.bf16.mxu0 0
    %974 = vmatpush2.bf16.xpose.msra.mxu0 0
    %975 = vmatprep.subr.bf16.mxu0 0
    %976 = vmatpush2.bf16.xpose.msra.mxu0 0
    %977 = vmatprep.subr.bf16.mxu0 0
    %978 = vmatpush2.bf16.xpose.msra.mxu0 0
    %979 = vmatprep.subr.bf16.mxu0 0
    %980 = vmatpush2.bf16.xpose.msra.mxu0 0
    %981 = vmatprep.subr.bf16.mxu0 0
    %982 = vmatpush2.bf16.xpose.msra.mxu0 0
    %983 = vmatprep.subr.bf16.mxu0 0
    %984 = vmatpush2.bf16.xpose.msra.mxu0 0
    %985 = vmatprep.mubr.bf16.mxu0 0
    %986 = vmatmul.mubr.bf16.gmra.mxu0 %v946
    %v987 = vpop.f32.mrf.mxu0
    %v988 = vadd.f32 %v951, %v987
    %v989 = vpop.f32.mrf.mxu0
    %v990 = vpop.f32.mrf.mxu0
    %v991 = vpop.f32.mrf.mxu0
    %992 = vdwg.mxu0
    %vm993 = vcmask 130048
    %994 = vst.msk [vmem:[#allocation11] sm:$0xff] %vm993, %v988
    // Predicated region
    $region66: #{tpu_custom_call.1} parent=1 // pred_check
      _
    $region67: #{tpu_custom_call.1} parent=1 // pred_check_branch
      %996 = sbr.rel (0) target = $region69
    $region68: #{tpu_custom_call.1} parent=1 // pred_region
      %s998 = ssub.s32 128, 128
      %999 = vsyncadd [#allocation4], %s998
      %s1001 = sshll.u32 [#allocation11], 4
      %s1002 = int_to_ptr.vmem [resolvable:$true] %s1001
      %1004 = dma.vmem_to_hbm [thread:$0]  %s1002, 128, %s11, [#allocation4]
    $region69: #{tpu_custom_call.1} parent=1 // pred_fallthru
      _
    // Predicated region
    $region70: #{tpu_custom_call.1} parent=1 // pred_check
      _
    $region71: #{tpu_custom_call.1} parent=1 // pred_check_branch
      %1006 = sbr.rel (0) target = $region73
    $region72: #{tpu_custom_call.1} parent=1 // pred_region
      %1007 = dma.done [#allocation4], 128
    $region73: #{tpu_custom_call.1} parent=1 // pred_fallthru
      _
    %1008 = vsyncpa [#allocation3], 1
    %1009 = vsyncpa [#allocation6], 1
    %1010 = vsyncpa [#allocation9], 1
    %1011 = vsyncpa [#allocation4], 1

</llo_original>
